<compile_context>
chip_gen: v6e
topology: v6e:2x2x1
jax: 0.10.0
libtpu: 0.0.40
codegen_flags: <defaults>
</compile_context>

<pallas_src>
import functools

import numpy as np
import jax
import jax.numpy as jnp
from jax.experimental import pallas as pl
from jax.experimental.pallas import tpu as pltpu

EPS = 1e-5  # nn.InstanceNorm2d default eps, affine=False, biased variance


def _round_up8(c):
    return -(-c // 8) * 8


def _pick_batch_block(n, max_block=8):
    """Largest divisor of n that is <= max_block, keeping >=2 grid steps when n >= 2
    (so both v7x TensorCores get work; on v5e/v6e the grid is a serial loop anyway)."""
    best = 1
    for b in range(1, min(n, max_block) + 1):
        if n % b == 0 and (n < 2 or n // b >= 2):
            best = b
    return best


def _build_tap_masks(H, W, B):
    """(9, B*HW) f32 multiplicative border masks, one per 3x3 tap.

    Positions are taken modulo HW (per-image), so with B images stacked along the lane axis
    every rolled read that would cross an image boundary (or wrap around the block) lands on
    a masked-out border position."""
    HW = H * W
    L = B * HW
    pos = np.arange(L) % HW
    h = pos // W
    w = pos % W
    masks = np.ones((9, L), np.float32)
    for ky in range(3):
        for kx in range(3):
            m = np.ones((L,), bool)
            if ky == 0:
                m &= h >= 1
            if ky == 2:
                m &= h <= H - 2
            if kx == 0:
                m &= w >= 1
            if kx == 2:
                m &= w <= W - 2
            masks[ky * 3 + kx] = m.astype(np.float32)
    return jnp.asarray(masks)


def _prep_weight(w_oihw, cin_p, cout_p):
    """OIHW -> (Cout_p, 9*Cin_p) bf16 slab; tap-major / channel-minor to match _im2col.
    Padded rows/cols are zero."""
    O, I, KH, KW = w_oihw.shape
    w = jnp.transpose(w_oihw, (0, 2, 3, 1)).reshape(O, KH * KW, I)
    w = jnp.pad(w, ((0, cout_p - O), (0, 0), (0, cin_p - I)))
    return w.reshape(cout_p, KH * KW * cin_p).astype(jnp.bfloat16)


def _im2col(x2d, masks, W, L):
    """(C_p, L) f32 -> (9*C_p, L) f32 via 9 lane rotations + precomputed border masks.

    C_p is a multiple of 8, so the concatenate stacks on (8,128) tile boundaries."""
    taps = []
    for ky in range(3):
        for kx in range(3):
            k = ky * 3 + kx
            off = (ky - 1) * W + (kx - 1)
            t = x2d if off == 0 else pltpu.roll(x2d, (-off) % L, 1)
            if k != 4:  # center tap has no border condition
                t = t * masks[k:k + 1]  # f32 mask mul (v5e: no bf16 VPU), broadcast over C
            taps.append(t)
    return jnp.concatenate(taps, axis=0)


def _conv_in_relu(x2d, w2d_bf16, masks, W, HW, B):
    """One stage: conv3x3(pad=1, no bias) + per-image InstanceNorm2d + ReLU.

    x2d: (Cin_p, B*HW) f32, w2d_bf16: (Cout_p, 9*Cin_p) bf16 -> (Cout_p, B*HW) f32."""
    L = B * HW
    patches = _im2col(x2d, masks, W, L).astype(jnp.bfloat16)       # cast just before the dot
    acc = jnp.dot(w2d_bf16, patches, preferred_element_type=jnp.float32)  # (Cout_p, L) f32

    # InstanceNorm2d: per-channel, per-image stats.  Images live in HW-wide lane slices
    # (multiples of 128 -> tile-aligned static slices), stats in f32, single traversal.
    inv_hw = 1.0 / HW
    outs = []
    for b in range(B):
        a = acc[:, b * HW:(b + 1) * HW]
        s = jnp.sum(a, axis=-1, keepdims=True)
        ss = jnp.sum(a * a, axis=-1, keepdims=True)
        mean = s * inv_hw
        var = ss * inv_hw - mean * mean
        outs.append(jnp.maximum((a - mean) * jax.lax.rsqrt(var + EPS), 0.0))
    return outs[0] if B == 1 else jnp.concatenate(outs, axis=1)


def _conv_block_kernel(W, HW, B, x_ref, w1_ref, w2_ref, masks_ref, o_ref):
    """Fused ConvBlock for one batch block of B images stacked along the lane axis.

    x_ref    : (1, Cin_p, B*HW) f32
    w1_ref   : (Cmid_p, 9*Cin_p) bf16   (resident across the grid)
    w2_ref   : (Cout_p, 9*Cmid_p) bf16  (resident across the grid)
    masks_ref: (9, B*HW) f32            (resident across the grid)
    o_ref    : (1, Cout_p, B*HW) f32
    """
    masks = masks_ref[...]                              # loaded once, shared by both stages
    x = x_ref[0]                                        # (Cin_p, L)
    y = _conv_in_relu(x, w1_ref[...], masks, W, HW, B)  # (Cmid_p, L), stays on-chip
    z = _conv_in_relu(y, w2_ref[...], masks, W, HW, B)  # (Cout_p, L)
    o_ref[0] = z.astype(o_ref.dtype)


def conv_block_forward(x_nchw, w1_oihw, w2_oihw):
    """ConvBlock forward. NCHW activations / OIHW weights, exactly like the PyTorch module."""
    N, Cin, H, W = x_nchw.shape
    Cmid = w1_oihw.shape[0]
    Cout = w2_oihw.shape[0]
    HW = H * W

    Cin_p, Cmid_p, Cout_p = _round_up8(Cin), _round_up8(Cmid), _round_up8(Cout)
    B = _pick_batch_block(N)          # images per grid step, stacked along lanes
    G = N // B                        # grid steps
    L = B * HW

    # Wrapper-side layout plumbing (one-time XLA ops): pad channels to a sublane multiple and
    # pack B images along the lane axis -> (G, Cin_p, B*HW).
    x = x_nchw.astype(jnp.float32).reshape(N, Cin, HW)
    if Cin_p != Cin:
        x = jnp.pad(x, ((0, 0), (0, Cin_p - Cin), (0, 0)))
    x = x.reshape(G, B, Cin_p, HW).transpose(0, 2, 1, 3).reshape(G, Cin_p, L)

    w1 = _prep_weight(w1_oihw, Cin_p, Cmid_p)    # (Cmid_p, 9*Cin_p) bf16
    w2 = _prep_weight(w2_oihw, Cmid_p, Cout_p)   # (Cout_p, 9*Cmid_p) bf16
    masks = _build_tap_masks(H, W, B)            # (9, L) f32

    out = pl.pallas_call(
        functools.partial(_conv_block_kernel, W, HW, B),
        out_shape=jax.ShapeDtypeStruct((G, Cout_p, L), jnp.float32),
        grid_spec=pltpu.PrefetchScalarGridSpec(
            num_scalar_prefetch=0,
            grid=(G,),
            in_specs=[
                pl.BlockSpec((1, Cin_p, L), lambda g: (g, 0, 0)),
                pl.BlockSpec((Cmid_p, 9 * Cin_p), lambda g: (0, 0)),   # resident
                pl.BlockSpec((Cout_p, 9 * Cmid_p), lambda g: (0, 0)),  # resident
                pl.BlockSpec((9, L), lambda g: (0, 0)),                # resident
            ],
            out_specs=pl.BlockSpec((1, Cout_p, L), lambda g: (g, 0, 0)),
        ),
        compiler_params=pltpu.CompilerParams(
            dimension_semantics=("parallel",),
            # No vmem_limit_bytes: working set << scoped default on all generations (v7x incl.)
        ),
    )(x, w1, w2, masks)

    # Unpack lanes back to NCHW and drop padded channels.
    out = out.reshape(G, Cout_p, B, HW).transpose(0, 2, 1, 3).reshape(N, Cout_p, H, W)
    return out[:, :Cout]


def _reference(x_nchw, w1_oihw, w2_oihw):
    """Pure-JAX f32 reference (lax.conv + two-pass InstanceNorm) for correctness checking."""
    def stage(x, w):
        y = jax.lax.conv_general_dilated(
            x, w, window_strides=(1, 1), padding="SAME",
            dimension_numbers=("NCHW", "OIHW", "NCHW"))
        mean = jnp.mean(y, axis=(2, 3), keepdims=True)
        var = jnp.mean((y - mean) ** 2, axis=(2, 3), keepdims=True)
        y = (y - mean) * jax.lax.rsqrt(var + EPS)
        return jnp.maximum(y, 0.0)
    return stage(stage(x_nchw, w1_oihw), w2_oihw)


if __name__ == "__main__":
    # N=4 so the batched-lane path is exercised (B_blk=2, grid=2): tests cross-image roll
    # masking, per-image InstanceNorm, and the pack/unpack layout plumbing.
    N, Cin, Cmid, Cout, H, W = 4, 4, 8, 4, 16, 16
    key = jax.random.PRNGKey(0)
    kx, k1, k2 = jax.random.split(key, 3)

    x = jax.random.normal(kx, (N, Cin, H, W), dtype=jnp.float32)
    w1 = jax.random.normal(k1, (Cmid, Cin, 3, 3), dtype=jnp.float32) * (1.0 / (Cin * 9) ** 0.5)
    w2 = jax.random.normal(k2, (Cout, Cmid, 3, 3), dtype=jnp.float32) * (1.0 / (Cmid * 9) ** 0.5)

    fwd = jax.jit(conv_block_forward)
    out = jax.block_until_ready(fwd(x, w1, w2))
    ref = jax.block_until_ready(_reference(x, w1, w2))

    assert out.shape == (N, Cout, H, W)
    # Tolerance reflects bf16 MXU operands (per perf review); stats/accumulation remain f32.
    assert jnp.allclose(out, ref, atol=5e-2, rtol=5e-2), float(jnp.max(jnp.abs(out - ref)))
    print("KERNEL_OK")
</pallas_src>

<mosaic_0001>
module attributes {stable_mosaic.version = 11 : i64} {
  func.func @_conv_block_kernel(%arg0: i32, %arg1: memref<1x8x512xf32, #tpu.memory_space<vmem>>, %arg2: memref<8x72xbf16, #tpu.memory_space<vmem>>, %arg3: memref<8x72xbf16, #tpu.memory_space<vmem>>, %arg4: memref<9x512xf32, #tpu.memory_space<vmem>>, %arg5: memref<1x8x512xf32, #tpu.memory_space<vmem>>) attributes {dimension_semantics = [#tpu.dimension_semantics<parallel>], iteration_bounds = array<i64: 2>, scalar_prefetch = 0 : i64, scratch_operands = 0 : i64, tpu.core_type = #tpu.core_type<tc>, window_params = [{transform_indices = @transform_0, window_bounds = array<i64: 1, 8, 512>}, {pipeline_mode = #tpu.pipeline_mode<synchronous>, transform_indices = @transform_1, window_bounds = array<i64: 8, 72>}, {pipeline_mode = #tpu.pipeline_mode<synchronous>, transform_indices = @transform_2, window_bounds = array<i64: 8, 72>}, {pipeline_mode = #tpu.pipeline_mode<synchronous>, transform_indices = @transform_3, window_bounds = array<i64: 9, 512>}, {transform_indices = @transform_4, window_bounds = array<i64: 1, 8, 512>}]} {
    %c0 = arith.constant 0 : index
    %c0_0 = arith.constant 0 : index
    %0 = vector.load %arg4[%c0, %c0_0] : memref<9x512xf32, #tpu.memory_space<vmem>>, vector<9x512xf32>
    %c0_1 = arith.constant 0 : index
    %c0_2 = arith.constant 0 : index
    %c0_3 = arith.constant 0 : index
    %1 = vector.load %arg1[%c0_1, %c0_2, %c0_3] : memref<1x8x512xf32, #tpu.memory_space<vmem>>, vector<1x8x512xf32>
    %2 = vector.shape_cast %1 : vector<1x8x512xf32> to vector<8x512xf32>
    %c0_4 = arith.constant 0 : index
    %c0_5 = arith.constant 0 : index
    %3 = vector.load %arg2[%c0_4, %c0_5] : memref<8x72xbf16, #tpu.memory_space<vmem>>, vector<8x72xbf16>
    %c17_i32 = arith.constant 17 : i32
    %4 = tpu.dynamic_rotate %2 by %c17_i32 dim 1 : vector<8x512xf32>, i32 -> vector<8x512xf32>
    %5 = vector.extract_strided_slice %0 {offsets = [0, 0], sizes = [1, 512], strides = [1, 1]} : vector<9x512xf32> to vector<1x512xf32>
    %6 = vector.broadcast %5 : vector<1x512xf32> to vector<8x512xf32>
    %7 = arith.mulf %4, %6 : vector<8x512xf32>
    %c16_i32 = arith.constant 16 : i32
    %8 = tpu.dynamic_rotate %2 by %c16_i32 dim 1 : vector<8x512xf32>, i32 -> vector<8x512xf32>
    %9 = vector.extract_strided_slice %0 {offsets = [1, 0], sizes = [1, 512], strides = [1, 1]} : vector<9x512xf32> to vector<1x512xf32>
    %10 = vector.broadcast %9 : vector<1x512xf32> to vector<8x512xf32>
    %11 = arith.mulf %8, %10 : vector<8x512xf32>
    %c15_i32 = arith.constant 15 : i32
    %12 = tpu.dynamic_rotate %2 by %c15_i32 dim 1 : vector<8x512xf32>, i32 -> vector<8x512xf32>
    %13 = vector.extract_strided_slice %0 {offsets = [2, 0], sizes = [1, 512], strides = [1, 1]} : vector<9x512xf32> to vector<1x512xf32>
    %14 = vector.broadcast %13 : vector<1x512xf32> to vector<8x512xf32>
    %15 = arith.mulf %12, %14 : vector<8x512xf32>
    %c1_i32 = arith.constant 1 : i32
    %16 = tpu.dynamic_rotate %2 by %c1_i32 dim 1 : vector<8x512xf32>, i32 -> vector<8x512xf32>
    %17 = vector.extract_strided_slice %0 {offsets = [3, 0], sizes = [1, 512], strides = [1, 1]} : vector<9x512xf32> to vector<1x512xf32>
    %18 = vector.broadcast %17 : vector<1x512xf32> to vector<8x512xf32>
    %19 = arith.mulf %16, %18 : vector<8x512xf32>
    %c511_i32 = arith.constant 511 : i32
    %20 = tpu.dynamic_rotate %2 by %c511_i32 dim 1 : vector<8x512xf32>, i32 -> vector<8x512xf32>
    %21 = vector.extract_strided_slice %0 {offsets = [5, 0], sizes = [1, 512], strides = [1, 1]} : vector<9x512xf32> to vector<1x512xf32>
    %22 = vector.broadcast %21 : vector<1x512xf32> to vector<8x512xf32>
    %23 = arith.mulf %20, %22 : vector<8x512xf32>
    %c497_i32 = arith.constant 497 : i32
    %24 = tpu.dynamic_rotate %2 by %c497_i32 dim 1 : vector<8x512xf32>, i32 -> vector<8x512xf32>
    %25 = vector.extract_strided_slice %0 {offsets = [6, 0], sizes = [1, 512], strides = [1, 1]} : vector<9x512xf32> to vector<1x512xf32>
    %26 = vector.broadcast %25 : vector<1x512xf32> to vector<8x512xf32>
    %27 = arith.mulf %24, %26 : vector<8x512xf32>
    %c496_i32 = arith.constant 496 : i32
    %28 = tpu.dynamic_rotate %2 by %c496_i32 dim 1 : vector<8x512xf32>, i32 -> vector<8x512xf32>
    %29 = vector.extract_strided_slice %0 {offsets = [7, 0], sizes = [1, 512], strides = [1, 1]} : vector<9x512xf32> to vector<1x512xf32>
    %30 = vector.broadcast %29 : vector<1x512xf32> to vector<8x512xf32>
    %31 = arith.mulf %28, %30 : vector<8x512xf32>
    %c495_i32 = arith.constant 495 : i32
    %32 = tpu.dynamic_rotate %2 by %c495_i32 dim 1 : vector<8x512xf32>, i32 -> vector<8x512xf32>
    %33 = vector.extract_strided_slice %0 {offsets = [8, 0], sizes = [1, 512], strides = [1, 1]} : vector<9x512xf32> to vector<1x512xf32>
    %34 = vector.broadcast %33 : vector<1x512xf32> to vector<8x512xf32>
    %35 = arith.mulf %32, %34 : vector<8x512xf32>
    %36 = tpu.concatenate %7, %11, %15, %19, %2, %23, %27, %31, %35 in 0 : vector<8x512xf32>, vector<8x512xf32>, vector<8x512xf32>, vector<8x512xf32>, vector<8x512xf32>, vector<8x512xf32>, vector<8x512xf32>, vector<8x512xf32>, vector<8x512xf32> -> vector<72x512xf32>
    %37 = arith.truncf %36 : vector<72x512xf32> to vector<72x512xbf16>
    %cst = arith.constant dense<0.000000e+00> : vector<8x512xf32>
    %38 = tpu.matmul %3, %37, %cst {dimension_numbers = #tpu.dot_dimension_numbers<[1], [0], [0], [1], [0, 0, 1, 1], [], []>} : vector<8x72xbf16>, vector<72x512xbf16>, vector<8x512xf32> -> vector<8x512xf32>
    %39 = vector.extract_strided_slice %38 {offsets = [0, 0], sizes = [8, 256], strides = [1, 1]} : vector<8x512xf32> to vector<8x256xf32>
    %cst_6 = arith.constant dense<0.000000e+00> : vector<8xf32>
    %40 = vector.multi_reduction <add>, %39, %cst_6 [1] : vector<8x256xf32> to vector<8xf32>
    %41 = vector.shape_cast %40 : vector<8xf32> to vector<8x1xf32>
    %42 = arith.mulf %39, %39 : vector<8x256xf32>
    %cst_7 = arith.constant dense<0.000000e+00> : vector<8xf32>
    %43 = vector.multi_reduction <add>, %42, %cst_7 [1] : vector<8x256xf32> to vector<8xf32>
    %44 = vector.shape_cast %43 : vector<8xf32> to vector<8x1xf32>
    %cst_8 = arith.constant 3.906250e-03 : f32
    %45 = vector.broadcast %cst_8 : f32 to vector<8x1xf32>
    %46 = arith.mulf %41, %45 : vector<8x1xf32>
    %cst_9 = arith.constant 3.906250e-03 : f32
    %47 = vector.broadcast %cst_9 : f32 to vector<8x1xf32>
    %48 = arith.mulf %44, %47 : vector<8x1xf32>
    %49 = arith.mulf %46, %46 : vector<8x1xf32>
    %50 = arith.subf %48, %49 : vector<8x1xf32>
    %51 = vector.broadcast %46 : vector<8x1xf32> to vector<8x256xf32>
    %52 = arith.subf %39, %51 : vector<8x256xf32>
    %cst_10 = arith.constant 9.99999974E-6 : f32
    %53 = vector.broadcast %cst_10 : f32 to vector<8x1xf32>
    %54 = arith.addf %50, %53 : vector<8x1xf32>
    %55 = math.rsqrt %54 : vector<8x1xf32>
    %56 = vector.broadcast %55 : vector<8x1xf32> to vector<8x256xf32>
    %57 = arith.mulf %52, %56 : vector<8x256xf32>
    %cst_11 = arith.constant 0.000000e+00 : f32
    %58 = vector.broadcast %cst_11 : f32 to vector<8x256xf32>
    %59 = arith.maximumf %57, %58 : vector<8x256xf32>
    %60 = vector.extract_strided_slice %38 {offsets = [0, 256], sizes = [8, 256], strides = [1, 1]} : vector<8x512xf32> to vector<8x256xf32>
    %cst_12 = arith.constant dense<0.000000e+00> : vector<8xf32>
    %61 = vector.multi_reduction <add>, %60, %cst_12 [1] : vector<8x256xf32> to vector<8xf32>
    %62 = vector.shape_cast %61 : vector<8xf32> to vector<8x1xf32>
    %63 = arith.mulf %60, %60 : vector<8x256xf32>
    %cst_13 = arith.constant dense<0.000000e+00> : vector<8xf32>
    %64 = vector.multi_reduction <add>, %63, %cst_13 [1] : vector<8x256xf32> to vector<8xf32>
    %65 = vector.shape_cast %64 : vector<8xf32> to vector<8x1xf32>
    %cst_14 = arith.constant 3.906250e-03 : f32
    %66 = vector.broadcast %cst_14 : f32 to vector<8x1xf32>
    %67 = arith.mulf %62, %66 : vector<8x1xf32>
    %cst_15 = arith.constant 3.906250e-03 : f32
    %68 = vector.broadcast %cst_15 : f32 to vector<8x1xf32>
    %69 = arith.mulf %65, %68 : vector<8x1xf32>
    %70 = arith.mulf %67, %67 : vector<8x1xf32>
    %71 = arith.subf %69, %70 : vector<8x1xf32>
    %72 = vector.broadcast %67 : vector<8x1xf32> to vector<8x256xf32>
    %73 = arith.subf %60, %72 : vector<8x256xf32>
    %cst_16 = arith.constant 9.99999974E-6 : f32
    %74 = vector.broadcast %cst_16 : f32 to vector<8x1xf32>
    %75 = arith.addf %71, %74 : vector<8x1xf32>
    %76 = math.rsqrt %75 : vector<8x1xf32>
    %77 = vector.broadcast %76 : vector<8x1xf32> to vector<8x256xf32>
    %78 = arith.mulf %73, %77 : vector<8x256xf32>
    %cst_17 = arith.constant 0.000000e+00 : f32
    %79 = vector.broadcast %cst_17 : f32 to vector<8x256xf32>
    %80 = arith.maximumf %78, %79 : vector<8x256xf32>
    %81 = tpu.concatenate %59, %80 in 1 : vector<8x256xf32>, vector<8x256xf32> -> vector<8x512xf32>
    %c0_18 = arith.constant 0 : index
    %c0_19 = arith.constant 0 : index
    %82 = vector.load %arg3[%c0_18, %c0_19] : memref<8x72xbf16, #tpu.memory_space<vmem>>, vector<8x72xbf16>
    %c17_i32_20 = arith.constant 17 : i32
    %83 = tpu.dynamic_rotate %81 by %c17_i32_20 dim 1 : vector<8x512xf32>, i32 -> vector<8x512xf32>
    %84 = vector.extract_strided_slice %0 {offsets = [0, 0], sizes = [1, 512], strides = [1, 1]} : vector<9x512xf32> to vector<1x512xf32>
    %85 = vector.broadcast %84 : vector<1x512xf32> to vector<8x512xf32>
    %86 = arith.mulf %83, %85 : vector<8x512xf32>
    %c16_i32_21 = arith.constant 16 : i32
    %87 = tpu.dynamic_rotate %81 by %c16_i32_21 dim 1 : vector<8x512xf32>, i32 -> vector<8x512xf32>
    %88 = vector.extract_strided_slice %0 {offsets = [1, 0], sizes = [1, 512], strides = [1, 1]} : vector<9x512xf32> to vector<1x512xf32>
    %89 = vector.broadcast %88 : vector<1x512xf32> to vector<8x512xf32>
    %90 = arith.mulf %87, %89 : vector<8x512xf32>
    %c15_i32_22 = arith.constant 15 : i32
    %91 = tpu.dynamic_rotate %81 by %c15_i32_22 dim 1 : vector<8x512xf32>, i32 -> vector<8x512xf32>
    %92 = vector.extract_strided_slice %0 {offsets = [2, 0], sizes = [1, 512], strides = [1, 1]} : vector<9x512xf32> to vector<1x512xf32>
    %93 = vector.broadcast %92 : vector<1x512xf32> to vector<8x512xf32>
    %94 = arith.mulf %91, %93 : vector<8x512xf32>
    %c1_i32_23 = arith.constant 1 : i32
    %95 = tpu.dynamic_rotate %81 by %c1_i32_23 dim 1 : vector<8x512xf32>, i32 -> vector<8x512xf32>
    %96 = vector.extract_strided_slice %0 {offsets = [3, 0], sizes = [1, 512], strides = [1, 1]} : vector<9x512xf32> to vector<1x512xf32>
    %97 = vector.broadcast %96 : vector<1x512xf32> to vector<8x512xf32>
    %98 = arith.mulf %95, %97 : vector<8x512xf32>
    %c511_i32_24 = arith.constant 511 : i32
    %99 = tpu.dynamic_rotate %81 by %c511_i32_24 dim 1 : vector<8x512xf32>, i32 -> vector<8x512xf32>
    %100 = vector.extract_strided_slice %0 {offsets = [5, 0], sizes = [1, 512], strides = [1, 1]} : vector<9x512xf32> to vector<1x512xf32>
    %101 = vector.broadcast %100 : vector<1x512xf32> to vector<8x512xf32>
    %102 = arith.mulf %99, %101 : vector<8x512xf32>
    %c497_i32_25 = arith.constant 497 : i32
    %103 = tpu.dynamic_rotate %81 by %c497_i32_25 dim 1 : vector<8x512xf32>, i32 -> vector<8x512xf32>
    %104 = vector.extract_strided_slice %0 {offsets = [6, 0], sizes = [1, 512], strides = [1, 1]} : vector<9x512xf32> to vector<1x512xf32>
    %105 = vector.broadcast %104 : vector<1x512xf32> to vector<8x512xf32>
    %106 = arith.mulf %103, %105 : vector<8x512xf32>
    %c496_i32_26 = arith.constant 496 : i32
    %107 = tpu.dynamic_rotate %81 by %c496_i32_26 dim 1 : vector<8x512xf32>, i32 -> vector<8x512xf32>
    %108 = vector.extract_strided_slice %0 {offsets = [7, 0], sizes = [1, 512], strides = [1, 1]} : vector<9x512xf32> to vector<1x512xf32>
    %109 = vector.broadcast %108 : vector<1x512xf32> to vector<8x512xf32>
    %110 = arith.mulf %107, %109 : vector<8x512xf32>
    %c495_i32_27 = arith.constant 495 : i32
    %111 = tpu.dynamic_rotate %81 by %c495_i32_27 dim 1 : vector<8x512xf32>, i32 -> vector<8x512xf32>
    %112 = vector.extract_strided_slice %0 {offsets = [8, 0], sizes = [1, 512], strides = [1, 1]} : vector<9x512xf32> to vector<1x512xf32>
    %113 = vector.broadcast %112 : vector<1x512xf32> to vector<8x512xf32>
    %114 = arith.mulf %111, %113 : vector<8x512xf32>
    %115 = tpu.concatenate %86, %90, %94, %98, %81, %102, %106, %110, %114 in 0 : vector<8x512xf32>, vector<8x512xf32>, vector<8x512xf32>, vector<8x512xf32>, vector<8x512xf32>, vector<8x512xf32>, vector<8x512xf32>, vector<8x512xf32>, vector<8x512xf32> -> vector<72x512xf32>
    %116 = arith.truncf %115 : vector<72x512xf32> to vector<72x512xbf16>
    %cst_28 = arith.constant dense<0.000000e+00> : vector<8x512xf32>
    %117 = tpu.matmul %82, %116, %cst_28 {dimension_numbers = #tpu.dot_dimension_numbers<[1], [0], [0], [1], [0, 0, 1, 1], [], []>} : vector<8x72xbf16>, vector<72x512xbf16>, vector<8x512xf32> -> vector<8x512xf32>
    %118 = vector.extract_strided_slice %117 {offsets = [0, 0], sizes = [8, 256], strides = [1, 1]} : vector<8x512xf32> to vector<8x256xf32>
    %cst_29 = arith.constant dense<0.000000e+00> : vector<8xf32>
    %119 = vector.multi_reduction <add>, %118, %cst_29 [1] : vector<8x256xf32> to vector<8xf32>
    %120 = vector.shape_cast %119 : vector<8xf32> to vector<8x1xf32>
    %121 = arith.mulf %118, %118 : vector<8x256xf32>
    %cst_30 = arith.constant dense<0.000000e+00> : vector<8xf32>
    %122 = vector.multi_reduction <add>, %121, %cst_30 [1] : vector<8x256xf32> to vector<8xf32>
    %123 = vector.shape_cast %122 : vector<8xf32> to vector<8x1xf32>
    %cst_31 = arith.constant 3.906250e-03 : f32
    %124 = vector.broadcast %cst_31 : f32 to vector<8x1xf32>
    %125 = arith.mulf %120, %124 : vector<8x1xf32>
    %cst_32 = arith.constant 3.906250e-03 : f32
    %126 = vector.broadcast %cst_32 : f32 to vector<8x1xf32>
    %127 = arith.mulf %123, %126 : vector<8x1xf32>
    %128 = arith.mulf %125, %125 : vector<8x1xf32>
    %129 = arith.subf %127, %128 : vector<8x1xf32>
    %130 = vector.broadcast %125 : vector<8x1xf32> to vector<8x256xf32>
    %131 = arith.subf %118, %130 : vector<8x256xf32>
    %cst_33 = arith.constant 9.99999974E-6 : f32
    %132 = vector.broadcast %cst_33 : f32 to vector<8x1xf32>
    %133 = arith.addf %129, %132 : vector<8x1xf32>
    %134 = math.rsqrt %133 : vector<8x1xf32>
    %135 = vector.broadcast %134 : vector<8x1xf32> to vector<8x256xf32>
    %136 = arith.mulf %131, %135 : vector<8x256xf32>
    %cst_34 = arith.constant 0.000000e+00 : f32
    %137 = vector.broadcast %cst_34 : f32 to vector<8x256xf32>
    %138 = arith.maximumf %136, %137 : vector<8x256xf32>
    %139 = vector.extract_strided_slice %117 {offsets = [0, 256], sizes = [8, 256], strides = [1, 1]} : vector<8x512xf32> to vector<8x256xf32>
    %cst_35 = arith.constant dense<0.000000e+00> : vector<8xf32>
    %140 = vector.multi_reduction <add>, %139, %cst_35 [1] : vector<8x256xf32> to vector<8xf32>
    %141 = vector.shape_cast %140 : vector<8xf32> to vector<8x1xf32>
    %142 = arith.mulf %139, %139 : vector<8x256xf32>
    %cst_36 = arith.constant dense<0.000000e+00> : vector<8xf32>
    %143 = vector.multi_reduction <add>, %142, %cst_36 [1] : vector<8x256xf32> to vector<8xf32>
    %144 = vector.shape_cast %143 : vector<8xf32> to vector<8x1xf32>
    %cst_37 = arith.constant 3.906250e-03 : f32
    %145 = vector.broadcast %cst_37 : f32 to vector<8x1xf32>
    %146 = arith.mulf %141, %145 : vector<8x1xf32>
    %cst_38 = arith.constant 3.906250e-03 : f32
    %147 = vector.broadcast %cst_38 : f32 to vector<8x1xf32>
    %148 = arith.mulf %144, %147 : vector<8x1xf32>
    %149 = arith.mulf %146, %146 : vector<8x1xf32>
    %150 = arith.subf %148, %149 : vector<8x1xf32>
    %151 = vector.broadcast %146 : vector<8x1xf32> to vector<8x256xf32>
    %152 = arith.subf %139, %151 : vector<8x256xf32>
    %cst_39 = arith.constant 9.99999974E-6 : f32
    %153 = vector.broadcast %cst_39 : f32 to vector<8x1xf32>
    %154 = arith.addf %150, %153 : vector<8x1xf32>
    %155 = math.rsqrt %154 : vector<8x1xf32>
    %156 = vector.broadcast %155 : vector<8x1xf32> to vector<8x256xf32>
    %157 = arith.mulf %152, %156 : vector<8x256xf32>
    %cst_40 = arith.constant 0.000000e+00 : f32
    %158 = vector.broadcast %cst_40 : f32 to vector<8x256xf32>
    %159 = arith.maximumf %157, %158 : vector<8x256xf32>
    %160 = tpu.concatenate %138, %159 in 1 : vector<8x256xf32>, vector<8x256xf32> -> vector<8x512xf32>
    %c0_41 = arith.constant 0 : index
    %c0_42 = arith.constant 0 : index
    %c0_43 = arith.constant 0 : index
    %161 = vector.load %arg5[%c0_41, %c0_42, %c0_43] : memref<1x8x512xf32, #tpu.memory_space<vmem>>, vector<1x8x512xf32>
    %162 = vector.shape_cast %161 : vector<1x8x512xf32> to vector<8x512xf32>
    %163 = vector.shape_cast %160 : vector<8x512xf32> to vector<1x8x512xf32>
    tpu.vector_store %arg5[%c0_41, %c0_42, %c0_43], %163 {strides = array<i32>} : memref<1x8x512xf32, #tpu.memory_space<vmem>>, vector<1x8x512xf32>,
    return
  }
  func.func @transform_0(%arg0: i32) -> (i32, i32, i32) {
    %c0_i32 = arith.constant 0 : i32
    %c0_i32_0 = arith.constant 0 : i32
    %c0_i32_1 = arith.constant 0 : i32
    return %arg0, %c0_i32, %c0_i32_0 : i32, i32, i32
  }
  func.func @transform_1(%arg0: i32) -> (i32, i32) {
    %c0_i32 = arith.constant 0 : i32
    %c0_i32_0 = arith.constant 0 : i32
    %c0_i32_1 = arith.constant 0 : i32
    return %c0_i32, %c0_i32_0 : i32, i32
  }
  func.func @transform_2(%arg0: i32) -> (i32, i32) {
    %c0_i32 = arith.constant 0 : i32
    %c0_i32_0 = arith.constant 0 : i32
    %c0_i32_1 = arith.constant 0 : i32
    return %c0_i32, %c0_i32_0 : i32, i32
  }
  func.func @transform_3(%arg0: i32) -> (i32, i32) {
    %c0_i32 = arith.constant 0 : i32
    %c0_i32_0 = arith.constant 0 : i32
    %c0_i32_1 = arith.constant 0 : i32
    return %c0_i32, %c0_i32_0 : i32, i32
  }
  func.func @transform_4(%arg0: i32) -> (i32, i32, i32) {
    %c0_i32 = arith.constant 0 : i32
    %c0_i32_0 = arith.constant 0 : i32
    %c0_i32_1 = arith.constant 0 : i32
    return %arg0, %c0_i32, %c0_i32_0 : i32, i32, i32
  }
}

</mosaic_0001>

<llo_original>
// kernel: conv_block_forward.1
$region0: #{conv_block_forward.1}
  #allocation0 [shape = 'u32[]', space=smem, size = 0x4, offset = 0x4, fixed_abs, tag = 'smem constant byte address 0x4 - core index']
  #allocation1 [shape = 'u32[144,128]{1,0:T(1,128)}', space=vmem, size = 0x12000, scoped, tag = 'internal scratch']
  %s0 = inlined_call_operand.vmem [shape: f32[2,8,512], index: 0, kind: input, shape index: {}]
  %s1 = inlined_call_operand.vmem [shape: bf16[8,72], index: 1, kind: input, shape index: {}]
  %s2 = inlined_call_operand.vmem [shape: bf16[8,72], index: 2, kind: input, shape index: {}]
  %s3 = inlined_call_operand.vmem [shape: f32[9,512], index: 3, kind: input, shape index: {}]
  %s4 = inlined_call_operand.vmem [shape: f32[2,8,512], index: 4, kind: output, shape index: {}]
  %s5 = sld [smem:[#allocation0]]
  $region49: #{conv_block_forward.1} parent=0
    _
  %s7 = ssub.s32 1, %s5
  %s8 = scalar_select 0, %s7, %s5
  loop: start=0, step=1, limit=4
  $region2: #{conv_block_forward.1} parent=0 // loop_pre_header
    _
  $region3: #{conv_block_forward.1} parent=0 // loop_header
    %s10 = sphi 0, %s14
    %p11 = scmp.ge.s32.totalorder %s10, 4
    %s20 = sphi 0, %s22
    %s23 = sphi 0, %s20
    %s24 = sphi 0, %s23
    %s40 = sphi 0, %s24
    %s44 = sphi 0, %s44
    %s46 = sphi 0, %s44
    %s47 = sphi 0, %s46
    %s61 = sphi 0, %s47
    %s65 = sphi 0, %s65
    %s67 = sphi 0, %s65
    %s68 = sphi 0, %s67
    %s82 = sphi 0, %s68
    %s86 = sphi 0, %s86
    %s88 = sphi 0, %s86
    %s89 = sphi 0, %s88
    %s103 = sphi 0, %s89
    %s109 = sphi 0, %s111
    %s112 = sphi 0, %s109
    %s113 = sphi 0, %s112
    %s129 = sphi 0, %s113
  $region4: #{conv_block_forward.1} parent=0 // loop_header_branch
    %13 = sbr.rel (%p11) target = $region8
  $region5: #{conv_block_forward.1} parent=0 // loop_body
    %s15 = ssub.s32 %s10, 1
    %s16 = ssub.s32 %s10, 2
    %s17 = sadd.s32 %s10, 1
    %s18 = ssub.s32 %s10, %s17
    %p19 = scmp.eq.s32.totalorder %s18, 0
    %s21 = sadd.s32 %s20, 1
    %s22 = scalar_select %p19, %s20, %s21
    %p25 = pneg %p19
    %p26 = scmp.eq.s32.totalorder %s10, 1
    %p27 = por %p25, %p26
    %p28 = scmp.ne.s32.totalorder %s20, %s23
    %p29 = scmp.eq.s32.totalorder %s10, 0
    %p30 = por %p28, %p29
    %p31 = scmp.ne.s32.totalorder %s20, %s23
    %p32 = scmp.eq.s32.totalorder %s15, 1
    %p33 = por %p31, %p32
    %p34 = scmp.ne.s32.totalorder %s23, %s24
    %p35 = scmp.eq.s32.totalorder %s15, 0
    %p36 = por %p34, %p35
    %p37 = scmp.ne.s32.totalorder %s23, %s24
    %p38 = scmp.eq.s32.totalorder %s16, 1
    %p39 = por %p37, %p38
    %p41 = scmp.ne.s32.totalorder %s24, %s40
    %p42 = scmp.eq.s32.totalorder %s16, 0
    %p43 = por %p41, %p42
    %s45 = sadd.s32 %s44, 1
    %p48 = scmp.eq.s32.totalorder %s10, 1
    %p49 = scmp.ne.s32.totalorder %s44, %s46
    %p50 = scmp.eq.s32.totalorder %s10, 0
    %p51 = por %p49, %p50
    %p52 = scmp.ne.s32.totalorder %s44, %s46
    %p53 = scmp.eq.s32.totalorder %s15, 1
    %p54 = por %p52, %p53
    %p55 = scmp.ne.s32.totalorder %s46, %s47
    %p56 = scmp.eq.s32.totalorder %s15, 0
    %p57 = por %p55, %p56
    %p58 = scmp.ne.s32.totalorder %s46, %s47
    %p59 = scmp.eq.s32.totalorder %s16, 1
    %p60 = por %p58, %p59
    %p62 = scmp.ne.s32.totalorder %s47, %s61
    %p63 = scmp.eq.s32.totalorder %s16, 0
    %p64 = por %p62, %p63
    %s66 = sadd.s32 %s65, 1
    %p69 = scmp.eq.s32.totalorder %s10, 1
    %p70 = scmp.ne.s32.totalorder %s65, %s67
    %p71 = scmp.eq.s32.totalorder %s10, 0
    %p72 = por %p70, %p71
    %p73 = scmp.ne.s32.totalorder %s65, %s67
    %p74 = scmp.eq.s32.totalorder %s15, 1
    %p75 = por %p73, %p74
    %p76 = scmp.ne.s32.totalorder %s67, %s68
    %p77 = scmp.eq.s32.totalorder %s15, 0
    %p78 = por %p76, %p77
    %p79 = scmp.ne.s32.totalorder %s67, %s68
    %p80 = scmp.eq.s32.totalorder %s16, 1
    %p81 = por %p79, %p80
    %p83 = scmp.ne.s32.totalorder %s68, %s82
    %p84 = scmp.eq.s32.totalorder %s16, 0
    %p85 = por %p83, %p84
    %s87 = sadd.s32 %s86, 1
    %p90 = scmp.eq.s32.totalorder %s10, 1
    %p91 = scmp.ne.s32.totalorder %s86, %s88
    %p92 = scmp.eq.s32.totalorder %s10, 0
    %p93 = por %p91, %p92
    %p94 = scmp.ne.s32.totalorder %s86, %s88
    %p95 = scmp.eq.s32.totalorder %s15, 1
    %p96 = por %p94, %p95
    %p97 = scmp.ne.s32.totalorder %s88, %s89
    %p98 = scmp.eq.s32.totalorder %s15, 0
    %p99 = por %p97, %p98
    %p100 = scmp.ne.s32.totalorder %s88, %s89
    %p101 = scmp.eq.s32.totalorder %s16, 1
    %p102 = por %p100, %p101
    %p104 = scmp.ne.s32.totalorder %s89, %s103
    %p105 = scmp.eq.s32.totalorder %s16, 0
    %p106 = por %p104, %p105
    %s107 = ssub.s32 %s10, %s17
    %p108 = scmp.eq.s32.totalorder %s107, 0
    %s110 = sadd.s32 %s109, 1
    %s111 = scalar_select %p108, %s109, %s110
    %p114 = pneg %p108
    %p115 = scmp.eq.s32.totalorder %s10, 1
    %p116 = por %p114, %p115
    %p117 = scmp.ne.s32.totalorder %s109, %s112
    %p118 = scmp.eq.s32.totalorder %s10, 0
    %p119 = por %p117, %p118
    %p120 = scmp.ne.s32.totalorder %s109, %s112
    %p121 = scmp.eq.s32.totalorder %s15, 1
    %p122 = por %p120, %p121
    %p123 = scmp.ne.s32.totalorder %s112, %s113
    %p124 = scmp.eq.s32.totalorder %s15, 0
    %p125 = por %p123, %p124
    %p126 = scmp.ne.s32.totalorder %s112, %s113
    %p127 = scmp.eq.s32.totalorder %s16, 1
    %p128 = por %p126, %p127
    %p130 = scmp.ne.s32.totalorder %s113, %s129
    %p131 = scmp.eq.s32.totalorder %s16, 0
    %p132 = por %p130, %p131
    %p133 = scmp.le.s32.totalorder 1, %s10
    %p134 = scmp.lt.s32.totalorder %s10, 3
    %p135 = pnand %p133, %p134
    %p136 = pneg %p135
    // Predicated region
    $region9: #{conv_block_forward.1} parent=5 // pred_check
      _
    $region10: #{conv_block_forward.1} parent=5 // pred_check_branch
      %138 = sbr.rel (%p135) target = $region12
    $region11: #{conv_block_forward.1} parent=5 // pred_region
      %s139 = ssub.s32 %s10, 1
      // Predicated region
      $region13: #{conv_block_forward.1} parent=11 // pred_check
        %p140 = pneg %p57
      $region14: #{conv_block_forward.1} parent=11 // pred_check_branch
        %142 = sbr.rel (%p140) target = $region16
      $region15: #{conv_block_forward.1} parent=11 // pred_region
        _
      $region16: #{conv_block_forward.1} parent=11 // pred_fallthru
        _
      // Predicated region
      $region17: #{conv_block_forward.1} parent=11 // pred_check
        %p143 = pneg %p78
      $region18: #{conv_block_forward.1} parent=11 // pred_check_branch
        %145 = sbr.rel (%p143) target = $region20
      $region19: #{conv_block_forward.1} parent=11 // pred_region
        _
      $region20: #{conv_block_forward.1} parent=11 // pred_fallthru
        _
      // Predicated region
      $region21: #{conv_block_forward.1} parent=11 // pred_check
        %p146 = pneg %p99
      $region22: #{conv_block_forward.1} parent=11 // pred_check_branch
        %148 = sbr.rel (%p146) target = $region24
      $region23: #{conv_block_forward.1} parent=11 // pred_region
        _
      $region24: #{conv_block_forward.1} parent=11 // pred_fallthru
        _
    $region12: #{conv_block_forward.1} parent=5 // pred_fallthru
      _
    %p149 = scmp.lt.s32.totalorder %s10, 2
    // Predicated region
    $region25: #{conv_block_forward.1} parent=5 // pred_check
      %p150 = pneg %p149
    $region26: #{conv_block_forward.1} parent=5 // pred_check_branch
      %152 = sbr.rel (%p150) target = $region28
    $region27: #{conv_block_forward.1} parent=5 // pred_region
      // Predicated region
      $region29: #{conv_block_forward.1} parent=27 // pred_check
        %p153 = pneg %p30
      $region30: #{conv_block_forward.1} parent=27 // pred_check_branch
        %155 = sbr.rel (%p153) target = $region32
      $region31: #{conv_block_forward.1} parent=27 // pred_region
        %p156 = scmp.lt.s32.totalorder %s10, 1
        %s157 = scalar_select %p156, %s10, 1
        %s158 = smul.addr %s157, 4
        %s159 = smul.addr %s158, 8
        %s160 = scalar_lea.vmem %s0, %s159
      $region32: #{conv_block_forward.1} parent=27 // pred_fallthru
        _
    $region28: #{conv_block_forward.1} parent=5 // pred_fallthru
      _
    %p161 = scmp.le.s32.totalorder 1, %s10
    %p162 = scmp.lt.s32.totalorder %s10, 3
    %p163 = pnand %p161, %p162
    %p164 = pneg %p163
    // Predicated region
    $region33: #{conv_block_forward.1} parent=5 // pred_check
      _
    $region34: #{conv_block_forward.1} parent=5 // pred_check_branch
      %166 = sbr.rel (%p163) target = $region36
    $region35: #{conv_block_forward.1} parent=5 // pred_region
      %s167 = ssub.s32 %s10, 1
      %p168 = scmp.lt.s32.totalorder %s15, 1
      %s169 = scalar_select %p168, %s15, 1
      %s170 = smul.addr %s169, 4
      %s171 = smul.addr %s170, 8
      %s172 = scalar_lea.vmem %s0, %s171
      %p173 = pneg %p36
      %p174 = pneg %p33
      %p175 = pneg %p57
      %p176 = pneg %p54
      %p177 = pneg %p78
      %p178 = pneg %p75
      %p179 = pneg %p99
      %p180 = pneg %p96
      %p181 = pneg %p125
      %p182 = pneg %p122
      %p183 = scmp.lt.s32.totalorder %s15, 1
      %s184 = scalar_select %p183, %s15, 1
      %s185 = smul.addr %s184, 4
      %s186 = smul.addr %s185, 8
      %s187 = scalar_lea.vmem %s4, %s186
      %p188 = scmp.lt.s32.totalorder %s15, 1
      %s189 = scalar_select %p188, %s15, 1
      %s190 = smul.addr %s189, 4
      %s191 = smul.addr %s190, 8
      %s192 = scalar_lea.vmem %s0, %s191
      %p193 = scmp.lt.s32.totalorder %s15, 1
      %s194 = scalar_select %p193, %s15, 1
      %s195 = smul.addr %s194, 4
      %s196 = smul.addr %s195, 8
      %s197 = scalar_lea.vmem %s4, %s196
      %v199 = vld [vmem:[%s3] sm:$0xff]
      %v200 = vld [vmem:[%s3 + $0x8] sm:$0xff]
      %v201 = vld [vmem:[%s3 + $0x10] sm:$0xff]
      %v202 = vld [vmem:[%s3 + $0x18] sm:$0xff]
      %v203 = vld [vmem:[%s3 + $0x20] sm:$0x1]
      %v204 = vld [vmem:[%s3 + $0x28] sm:$0x1]
      %v205 = vld [vmem:[%s3 + $0x30] sm:$0x1]
      %v206 = vld [vmem:[%s3 + $0x38] sm:$0x1]
      %v207 = vld [vmem:[%s192] sm:$0xff]
      %v208 = vld [vmem:[%s192 + $0x8] sm:$0xff]
      %v209 = vld [vmem:[%s192 + $0x10] sm:$0xff]
      %v210 = vld [vmem:[%s192 + $0x18] sm:$0xff]
      %v211 = vld [vmem:[%s1] sm:$0xf]
      %212 = vrot.lane.b32.xlu0 %v207, 17
      %v213 = vpop.permute.xlu0 %212
      %214 = vrot.lane.b32.xlu0 %v208, 17
      %v215 = vpop.permute.xlu0 %214
      %216 = vrot.lane.b32.xlu0 %v209, 17
      %v217 = vpop.permute.xlu0 %216
      %218 = vrot.lane.b32.xlu0 %v210, 17
      %v219 = vpop.permute.xlu0 %218
      %v220 = vlaneseq
      %v221 = vand.u32 %v220, 127
      %vm222 = vcmp.lt.s32.totalorder %v221, 17
      %v223 = vsel %vm222, %v217, %v219
      %v224 = vsel %vm222, %v215, %v217
      %v225 = vsel %vm222, %v213, %v215
      %v226 = vsel %vm222, %v219, %v213
      %v227 = vlaneseq
      %v228 = vshrl.u32 %v227, 7
      %v229 = vsub.s32 0, %v228
      %v230 = vrot.slane %v199, %v229
      %v231 = vlaneseq
      %v232 = vshrl.u32 %v231, 7
      %v233 = vsub.s32 0, %v232
      %v234 = vrot.slane %v200, %v233
      %v235 = vlaneseq
      %v236 = vshrl.u32 %v235, 7
      %v237 = vsub.s32 0, %v236
      %v238 = vrot.slane %v201, %v237
      %v239 = vlaneseq
      %v240 = vshrl.u32 %v239, 7
      %v241 = vsub.s32 0, %v240
      %v242 = vrot.slane %v202, %v241
      %v243 = vmul.f32 %v226, %v230
      %v244 = vmul.f32 %v225, %v234
      %v245 = vmul.f32 %v224, %v238
      %v246 = vmul.f32 %v223, %v242
      %247 = vrot.lane.b32.xlu0 %v207, 16
      %v248 = vpop.permute.xlu0 %247
      %249 = vrot.lane.b32.xlu0 %v208, 16
      %v250 = vpop.permute.xlu0 %249
      %251 = vrot.lane.b32.xlu0 %v209, 16
      %v252 = vpop.permute.xlu0 %251
      %253 = vrot.lane.b32.xlu0 %v210, 16
      %v254 = vpop.permute.xlu0 %253
      %vm255 = vcmp.lt.s32.totalorder %v221, 16
      %v256 = vsel %vm255, %v252, %v254
      %v257 = vsel %vm255, %v250, %v252
      %v258 = vsel %vm255, %v248, %v250
      %v259 = vsel %vm255, %v254, %v248
      %v260 = vlaneseq
      %v261 = vshrl.u32 %v260, 7
      %v262 = vsub.s32 1, %v261
      %v263 = vrot.slane %v199, %v262
      %v264 = vlaneseq
      %v265 = vshrl.u32 %v264, 7
      %v266 = vsub.s32 1, %v265
      %v267 = vrot.slane %v200, %v266
      %v268 = vlaneseq
      %v269 = vshrl.u32 %v268, 7
      %v270 = vsub.s32 1, %v269
      %v271 = vrot.slane %v201, %v270
      %v272 = vlaneseq
      %v273 = vshrl.u32 %v272, 7
      %v274 = vsub.s32 1, %v273
      %v275 = vrot.slane %v202, %v274
      %v276 = vmul.f32 %v259, %v263
      %v277 = vmul.f32 %v258, %v267
      %v278 = vmul.f32 %v257, %v271
      %v279 = vmul.f32 %v256, %v275
      %280 = vrot.lane.b32.xlu0 %v207, 15
      %v281 = vpop.permute.xlu0 %280
      %282 = vrot.lane.b32.xlu0 %v208, 15
      %v283 = vpop.permute.xlu0 %282
      %284 = vrot.lane.b32.xlu0 %v209, 15
      %v285 = vpop.permute.xlu0 %284
      %286 = vrot.lane.b32.xlu0 %v210, 15
      %v287 = vpop.permute.xlu0 %286
      %vm288 = vcmp.lt.s32.totalorder %v221, 15
      %v289 = vsel %vm288, %v285, %v287
      %v290 = vsel %vm288, %v283, %v285
      %v291 = vsel %vm288, %v281, %v283
      %v292 = vsel %vm288, %v287, %v281
      %v293 = vlaneseq
      %v294 = vshrl.u32 %v293, 7
      %v295 = vsub.s32 2, %v294
      %v296 = vrot.slane %v199, %v295
      %v297 = vlaneseq
      %v298 = vshrl.u32 %v297, 7
      %v299 = vsub.s32 2, %v298
      %v300 = vrot.slane %v200, %v299
      %v301 = vlaneseq
      %v302 = vshrl.u32 %v301, 7
      %v303 = vsub.s32 2, %v302
      %v304 = vrot.slane %v201, %v303
      %v305 = vlaneseq
      %v306 = vshrl.u32 %v305, 7
      %v307 = vsub.s32 2, %v306
      %v308 = vrot.slane %v202, %v307
      %v309 = vmul.f32 %v292, %v296
      %v310 = vmul.f32 %v291, %v300
      %v311 = vmul.f32 %v290, %v304
      %v312 = vmul.f32 %v289, %v308
      %313 = vrot.lane.b32.xlu0 %v207, 1
      %v314 = vpop.permute.xlu0 %313
      %315 = vrot.lane.b32.xlu0 %v208, 1
      %v316 = vpop.permute.xlu0 %315
      %317 = vrot.lane.b32.xlu0 %v209, 1
      %v318 = vpop.permute.xlu0 %317
      %319 = vrot.lane.b32.xlu0 %v210, 1
      %v320 = vpop.permute.xlu0 %319
      %vm321 = vcmp.lt.s32.totalorder %v221, 1
      %v322 = vsel %vm321, %v318, %v320
      %v323 = vsel %vm321, %v316, %v318
      %v324 = vsel %vm321, %v314, %v316
      %v325 = vsel %vm321, %v320, %v314
      %v326 = vlaneseq
      %v327 = vshrl.u32 %v326, 7
      %v328 = vsub.s32 3, %v327
      %v329 = vrot.slane %v199, %v328
      %v330 = vlaneseq
      %v331 = vshrl.u32 %v330, 7
      %v332 = vsub.s32 3, %v331
      %v333 = vrot.slane %v200, %v332
      %v334 = vlaneseq
      %v335 = vshrl.u32 %v334, 7
      %v336 = vsub.s32 3, %v335
      %v337 = vrot.slane %v201, %v336
      %v338 = vlaneseq
      %v339 = vshrl.u32 %v338, 7
      %v340 = vsub.s32 3, %v339
      %v341 = vrot.slane %v202, %v340
      %v342 = vmul.f32 %v325, %v329
      %v343 = vmul.f32 %v324, %v333
      %v344 = vmul.f32 %v323, %v337
      %v345 = vmul.f32 %v322, %v341
      %346 = vrot.lane.b32.xlu0 %v207, 127
      %v347 = vpop.permute.xlu0 %346
      %348 = vrot.lane.b32.xlu0 %v208, 127
      %v349 = vpop.permute.xlu0 %348
      %350 = vrot.lane.b32.xlu0 %v209, 127
      %v351 = vpop.permute.xlu0 %350
      %352 = vrot.lane.b32.xlu0 %v210, 127
      %v353 = vpop.permute.xlu0 %352
      %vm354 = vcmp.lt.s32.totalorder %v221, 127
      %v355 = vsel %vm354, %v351, %v353
      %v356 = vsel %vm354, %v349, %v351
      %v357 = vsel %vm354, %v347, %v349
      %v358 = vsel %vm354, %v353, %v347
      %v359 = vlaneseq
      %v360 = vshrl.u32 %v359, 7
      %v361 = vsub.s32 5, %v360
      %v362 = vrot.slane %v199, %v361
      %v363 = vlaneseq
      %v364 = vshrl.u32 %v363, 7
      %v365 = vsub.s32 5, %v364
      %v366 = vrot.slane %v200, %v365
      %v367 = vlaneseq
      %v368 = vshrl.u32 %v367, 7
      %v369 = vsub.s32 5, %v368
      %v370 = vrot.slane %v201, %v369
      %v371 = vlaneseq
      %v372 = vshrl.u32 %v371, 7
      %v373 = vsub.s32 5, %v372
      %v374 = vrot.slane %v202, %v373
      %v375 = vmul.f32 %v357, %v362
      %v376 = vmul.f32 %v356, %v366
      %v377 = vmul.f32 %v355, %v370
      %v378 = vmul.f32 %v358, %v374
      %379 = vrot.lane.b32.xlu0 %v207, 113
      %v380 = vpop.permute.xlu0 %379
      %381 = vrot.lane.b32.xlu0 %v208, 113
      %v382 = vpop.permute.xlu0 %381
      %383 = vrot.lane.b32.xlu0 %v209, 113
      %v384 = vpop.permute.xlu0 %383
      %385 = vrot.lane.b32.xlu0 %v210, 113
      %v386 = vpop.permute.xlu0 %385
      %vm387 = vcmp.lt.s32.totalorder %v221, 113
      %v388 = vsel %vm387, %v384, %v386
      %v389 = vsel %vm387, %v382, %v384
      %v390 = vsel %vm387, %v380, %v382
      %v391 = vsel %vm387, %v386, %v380
      %v392 = vlaneseq
      %v393 = vshrl.u32 %v392, 7
      %v394 = vsub.s32 6, %v393
      %v395 = vrot.slane %v199, %v394
      %v396 = vlaneseq
      %v397 = vshrl.u32 %v396, 7
      %v398 = vsub.s32 6, %v397
      %v399 = vrot.slane %v200, %v398
      %v400 = vlaneseq
      %v401 = vshrl.u32 %v400, 7
      %v402 = vsub.s32 6, %v401
      %v403 = vrot.slane %v201, %v402
      %v404 = vlaneseq
      %v405 = vshrl.u32 %v404, 7
      %v406 = vsub.s32 6, %v405
      %v407 = vrot.slane %v202, %v406
      %v408 = vmul.f32 %v390, %v395
      %v409 = vmul.f32 %v389, %v399
      %v410 = vmul.f32 %v388, %v403
      %v411 = vmul.f32 %v391, %v407
      %412 = vrot.lane.b32.xlu0 %v207, 112
      %v413 = vpop.permute.xlu0 %412
      %414 = vrot.lane.b32.xlu0 %v208, 112
      %v415 = vpop.permute.xlu0 %414
      %416 = vrot.lane.b32.xlu0 %v209, 112
      %v417 = vpop.permute.xlu0 %416
      %418 = vrot.lane.b32.xlu0 %v210, 112
      %v419 = vpop.permute.xlu0 %418
      %vm420 = vcmp.lt.s32.totalorder %v221, 112
      %v421 = vsel %vm420, %v417, %v419
      %v422 = vsel %vm420, %v415, %v417
      %v423 = vsel %vm420, %v413, %v415
      %v424 = vsel %vm420, %v419, %v413
      %v425 = vlaneseq
      %v426 = vshrl.u32 %v425, 7
      %v427 = vsub.s32 7, %v426
      %v428 = vrot.slane %v199, %v427
      %v429 = vlaneseq
      %v430 = vshrl.u32 %v429, 7
      %v431 = vsub.s32 7, %v430
      %v432 = vrot.slane %v200, %v431
      %v433 = vlaneseq
      %v434 = vshrl.u32 %v433, 7
      %v435 = vsub.s32 7, %v434
      %v436 = vrot.slane %v201, %v435
      %v437 = vlaneseq
      %v438 = vshrl.u32 %v437, 7
      %v439 = vsub.s32 7, %v438
      %v440 = vrot.slane %v202, %v439
      %v441 = vmul.f32 %v423, %v428
      %v442 = vmul.f32 %v422, %v432
      %v443 = vmul.f32 %v421, %v436
      %v444 = vmul.f32 %v424, %v440
      %445 = vrot.lane.b32.xlu0 %v207, 111
      %v446 = vpop.permute.xlu0 %445
      %447 = vrot.lane.b32.xlu0 %v208, 111
      %v448 = vpop.permute.xlu0 %447
      %449 = vrot.lane.b32.xlu0 %v209, 111
      %v450 = vpop.permute.xlu0 %449
      %451 = vrot.lane.b32.xlu0 %v210, 111
      %v452 = vpop.permute.xlu0 %451
      %vm453 = vcmp.lt.s32.totalorder %v221, 111
      %v454 = vsel %vm453, %v450, %v452
      %v455 = vsel %vm453, %v448, %v450
      %v456 = vsel %vm453, %v446, %v448
      %v457 = vsel %vm453, %v452, %v446
      %v458 = vlaneseq
      %v459 = vshrl.u32 %v458, 7
      %v460 = vsub.s32 0, %v459
      %v461 = vrot.slane %v203, %v460
      %v462 = vlaneseq
      %v463 = vshrl.u32 %v462, 7
      %v464 = vsub.s32 0, %v463
      %v465 = vrot.slane %v204, %v464
      %v466 = vlaneseq
      %v467 = vshrl.u32 %v466, 7
      %v468 = vsub.s32 0, %v467
      %v469 = vrot.slane %v205, %v468
      %v470 = vlaneseq
      %v471 = vshrl.u32 %v470, 7
      %v472 = vsub.s32 0, %v471
      %v473 = vrot.slane %v206, %v472
      %v474 = vmul.f32 %v456, %v461
      %v475 = vmul.f32 %v455, %v465
      %v476 = vmul.f32 %v454, %v469
      %v477 = vmul.f32 %v457, %v473
      %v478 = vpack.c.bf16 %v276, %v243
      %v479 = vpack.c.bf16 %v277, %v244
      %v480 = vpack.c.bf16 %v278, %v245
      %v481 = vpack.c.bf16 %v279, %v246
      %v482 = vpack.c.bf16 %v342, %v309
      %v483 = vpack.c.bf16 %v343, %v310
      %v484 = vpack.c.bf16 %v344, %v311
      %v485 = vpack.c.bf16 %v345, %v312
      %v486 = vpack.c.bf16 %v375, %v207
      %v487 = vpack.c.bf16 %v376, %v208
      %v488 = vpack.c.bf16 %v377, %v209
      %v489 = vpack.c.bf16 %v378, %v210
      %v490 = vpack.c.bf16 %v441, %v408
      %v491 = vpack.c.bf16 %v442, %v409
      %v492 = vpack.c.bf16 %v443, %v410
      %v493 = vpack.c.bf16 %v444, %v411
      %v494 = vpack.c.bf16 %v474, %v474
      %v495 = vpack.c.bf16 %v475, %v475
      %v496 = vpack.c.bf16 %v476, %v476
      %v497 = vpack.c.bf16 %v477, %v477
      %vm498 = vcmask 588800
      %v500 = vsel %vm498, %v211, 0
      %vm502 = vcmask 1043456
      %v504 = vsel %vm502, %v494, 0
      %v507 = vsel %vm502, %v495, 0
      %v510 = vsel %vm502, %v496, 0
      %v513 = vsel %vm502, %v497, 0
      %515 = vmatprep.subr.bf16.mxu0 0
      %516 = vmatpush1.bf16.msra.mxu0 0
      %517 = vmatprep.subr.bf16.mxu0 0
      %518 = vmatpush1.bf16.msra.mxu0 0
      %519 = vmatprep.subr.bf16.mxu0 0
      %520 = vmatpush1.bf16.msra.mxu0 0
      %521 = vmatprep.subr.bf16.mxu0 %v507
      %522 = vmatpush1.bf16.msra.mxu0 %v504
      %523 = vmatprep.subr.bf16.mxu0 %v491
      %524 = vmatpush1.bf16.msra.mxu0 %v490
      %525 = vmatprep.subr.bf16.mxu0 %v487
      %526 = vmatpush1.bf16.msra.mxu0 %v486
      %527 = vmatprep.subr.bf16.mxu0 %v483
      %528 = vmatpush1.bf16.msra.mxu0 %v482
      %529 = vmatprep.subr.bf16.mxu0 %v479
      %530 = vmatpush1.bf16.msra.mxu0 %v478
      %531 = vmatprep.subr.bf16.mxu0 0
      %532 = vmatpush2.bf16.msra.mxu0 0
      %533 = vmatprep.subr.bf16.mxu0 0
      %534 = vmatpush2.bf16.msra.mxu0 0
      %535 = vmatprep.subr.bf16.mxu0 0
      %536 = vmatpush2.bf16.msra.mxu0 0
      %537 = vmatprep.subr.bf16.mxu0 0
      %538 = vmatpush2.bf16.msra.mxu0 0
      %539 = vmatprep.subr.bf16.mxu0 0
      %540 = vmatpush2.bf16.msra.mxu0 0
      %541 = vmatprep.subr.bf16.mxu0 0
      %542 = vmatpush2.bf16.msra.mxu0 0
      %543 = vmatprep.subr.bf16.mxu0 0
      %544 = vmatpush2.bf16.msra.mxu0 0
      %545 = vmatprep.subr.bf16.mxu0 0
      %546 = vmatpush2.bf16.msra.mxu0 0
      %547 = vmatprep.mubr.bf16.mxu0 0
      %548 = vmatmul.mubr.bf16.gmra.mxu0 %v500
      %v549 = vpop.f32.mrf.mxu0
      %v550 = vadd.f32 0.0, %v549
      %v551 = vpop.f32.mrf.mxu0
      %v552 = vadd.f32 0.0, %v551
      %v553 = vpop.f32.mrf.mxu0
      %v554 = vpop.f32.mrf.mxu0
      %555 = vdwg.mxu0
      %556 = vmatprep.subr.bf16.mxu0 0
      %557 = vmatpush1.bf16.msra.mxu0 0
      %558 = vmatprep.subr.bf16.mxu0 0
      %559 = vmatpush1.bf16.msra.mxu0 0
      %560 = vmatprep.subr.bf16.mxu0 0
      %561 = vmatpush1.bf16.msra.mxu0 0
      %562 = vmatprep.subr.bf16.mxu0 %v513
      %563 = vmatpush1.bf16.msra.mxu0 %v510
      %564 = vmatprep.subr.bf16.mxu0 %v493
      %565 = vmatpush1.bf16.msra.mxu0 %v492
      %566 = vmatprep.subr.bf16.mxu0 %v489
      %567 = vmatpush1.bf16.msra.mxu0 %v488
      %568 = vmatprep.subr.bf16.mxu0 %v485
      %569 = vmatpush1.bf16.msra.mxu0 %v484
      %570 = vmatprep.subr.bf16.mxu0 %v481
      %571 = vmatpush1.bf16.msra.mxu0 %v480
      %572 = vmatprep.subr.bf16.mxu0 0
      %573 = vmatpush2.bf16.msra.mxu0 0
      %574 = vmatprep.subr.bf16.mxu0 0
      %575 = vmatpush2.bf16.msra.mxu0 0
      %576 = vmatprep.subr.bf16.mxu0 0
      %577 = vmatpush2.bf16.msra.mxu0 0
      %578 = vmatprep.subr.bf16.mxu0 0
      %579 = vmatpush2.bf16.msra.mxu0 0
      %580 = vmatprep.subr.bf16.mxu0 0
      %581 = vmatpush2.bf16.msra.mxu0 0
      %582 = vmatprep.subr.bf16.mxu0 0
      %583 = vmatpush2.bf16.msra.mxu0 0
      %584 = vmatprep.subr.bf16.mxu0 0
      %585 = vmatpush2.bf16.msra.mxu0 0
      %586 = vmatprep.subr.bf16.mxu0 0
      %587 = vmatpush2.bf16.msra.mxu0 0
      %588 = vmatprep.mubr.bf16.mxu0 0
      %589 = vmatmul.mubr.bf16.gmra.mxu0 %v500
      %v590 = vpop.f32.mrf.mxu0
      %v591 = vadd.f32 0.0, %v590
      %v592 = vpop.f32.mrf.mxu0
      %v593 = vadd.f32 0.0, %v592
      %v594 = vpop.f32.mrf.mxu0
      %v595 = vpop.f32.mrf.mxu0
      %596 = vdwg.mxu0
      %v597 = vadd.f32 %v550, %v552
      %598 = vadd.xlane.f32.xlu0 %v597
      %v599 = vpop.xlane.xlu0 %598
      %v600 = vmul.f32 %v550, %v550
      %v601 = vmul.f32 %v552, %v552
      %v602 = vadd.f32 %v600, %v601
      %603 = vadd.xlane.f32.xlu0 %v602
      %v604 = vpop.xlane.xlu0 %603
      %v605 = vmul.f32 %v599, 0.00390625
      %v606 = vmul.f32 %v604, 0.00390625
      %v607 = vmul.f32 %v605, %v605
      %v608 = vsub.f32 %v606, %v607
      %v609 = vsub.f32 %v550, %v605
      %v610 = vsub.f32 %v552, %v605
      %v611 = vadd.f32 %v608, 1e-05
      %v612 = vrsqrt.pop %v611
      %v613 = vmul.f32 %v609, %v612
      %v614 = vmul.f32 %v610, %v612
      %v615 = vmax.f32 %v613, 0.0
      %v616 = vmax.f32 %v614, 0.0
      %v617 = vadd.f32 %v591, %v593
      %618 = vadd.xlane.f32.xlu0 %v617
      %v619 = vpop.xlane.xlu0 %618
      %v620 = vmul.f32 %v591, %v591
      %v621 = vmul.f32 %v593, %v593
      %v622 = vadd.f32 %v620, %v621
      %623 = vadd.xlane.f32.xlu0 %v622
      %v624 = vpop.xlane.xlu0 %623
      %v625 = vmul.f32 %v619, 0.00390625
      %v626 = vmul.f32 %v624, 0.00390625
      %v627 = vmul.f32 %v625, %v625
      %v628 = vsub.f32 %v626, %v627
      %v629 = vsub.f32 %v591, %v625
      %v630 = vsub.f32 %v593, %v625
      %v631 = vadd.f32 %v628, 1e-05
      %v632 = vrsqrt.pop %v631
      %v633 = vmul.f32 %v629, %v632
      %v634 = vmul.f32 %v630, %v632
      %v635 = vmax.f32 %v633, 0.0
      %v636 = vmax.f32 %v634, 0.0
      %v637 = vld [vmem:[%s2] sm:$0xf]
      %638 = vrot.lane.b32.xlu0 %v615, 17
      %v639 = vpop.permute.xlu0 %638
      %640 = vrot.lane.b32.xlu0 %v616, 17
      %v641 = vpop.permute.xlu0 %640
      %642 = vrot.lane.b32.xlu0 %v635, 17
      %v643 = vpop.permute.xlu0 %642
      %644 = vrot.lane.b32.xlu0 %v636, 17
      %v645 = vpop.permute.xlu0 %644
      %v646 = vsel %vm222, %v643, %v645
      %v647 = vsel %vm222, %v641, %v643
      %v648 = vsel %vm222, %v639, %v641
      %v649 = vsel %vm222, %v645, %v639
      %v650 = vmul.f32 %v649, %v230
      %v651 = vmul.f32 %v648, %v234
      %v652 = vmul.f32 %v647, %v238
      %v653 = vmul.f32 %v646, %v242
      %654 = vrot.lane.b32.xlu0 %v615, 16
      %v655 = vpop.permute.xlu0 %654
      %656 = vrot.lane.b32.xlu0 %v616, 16
      %v657 = vpop.permute.xlu0 %656
      %658 = vrot.lane.b32.xlu0 %v635, 16
      %v659 = vpop.permute.xlu0 %658
      %660 = vrot.lane.b32.xlu0 %v636, 16
      %v661 = vpop.permute.xlu0 %660
      %v662 = vsel %vm255, %v659, %v661
      %v663 = vsel %vm255, %v657, %v659
      %v664 = vsel %vm255, %v655, %v657
      %v665 = vsel %vm255, %v661, %v655
      %v666 = vmul.f32 %v665, %v263
      %v667 = vmul.f32 %v664, %v267
      %v668 = vmul.f32 %v663, %v271
      %v669 = vmul.f32 %v662, %v275
      %670 = vrot.lane.b32.xlu0 %v615, 15
      %v671 = vpop.permute.xlu0 %670
      %672 = vrot.lane.b32.xlu0 %v616, 15
      %v673 = vpop.permute.xlu0 %672
      %674 = vrot.lane.b32.xlu0 %v635, 15
      %v675 = vpop.permute.xlu0 %674
      %676 = vrot.lane.b32.xlu0 %v636, 15
      %v677 = vpop.permute.xlu0 %676
      %v678 = vsel %vm288, %v675, %v677
      %v679 = vsel %vm288, %v673, %v675
      %v680 = vsel %vm288, %v671, %v673
      %v681 = vsel %vm288, %v677, %v671
      %v682 = vmul.f32 %v681, %v296
      %v683 = vmul.f32 %v680, %v300
      %v684 = vmul.f32 %v679, %v304
      %v685 = vmul.f32 %v678, %v308
      %686 = vrot.lane.b32.xlu0 %v615, 1
      %v687 = vpop.permute.xlu0 %686
      %688 = vrot.lane.b32.xlu0 %v616, 1
      %v689 = vpop.permute.xlu0 %688
      %690 = vrot.lane.b32.xlu0 %v635, 1
      %v691 = vpop.permute.xlu0 %690
      %692 = vrot.lane.b32.xlu0 %v636, 1
      %v693 = vpop.permute.xlu0 %692
      %v694 = vsel %vm321, %v691, %v693
      %v695 = vsel %vm321, %v689, %v691
      %v696 = vsel %vm321, %v687, %v689
      %v697 = vsel %vm321, %v693, %v687
      %v698 = vmul.f32 %v697, %v329
      %v699 = vmul.f32 %v696, %v333
      %v700 = vmul.f32 %v695, %v337
      %v701 = vmul.f32 %v694, %v341
      %702 = vrot.lane.b32.xlu0 %v615, 127
      %v703 = vpop.permute.xlu0 %702
      %704 = vrot.lane.b32.xlu0 %v616, 127
      %v705 = vpop.permute.xlu0 %704
      %706 = vrot.lane.b32.xlu0 %v635, 127
      %v707 = vpop.permute.xlu0 %706
      %708 = vrot.lane.b32.xlu0 %v636, 127
      %v709 = vpop.permute.xlu0 %708
      %v710 = vsel %vm354, %v707, %v709
      %v711 = vsel %vm354, %v705, %v707
      %v712 = vsel %vm354, %v703, %v705
      %v713 = vsel %vm354, %v709, %v703
      %v714 = vmul.f32 %v712, %v362
      %v715 = vmul.f32 %v711, %v366
      %v716 = vmul.f32 %v710, %v370
      %v717 = vmul.f32 %v713, %v374
      %718 = vrot.lane.b32.xlu0 %v615, 113
      %v719 = vpop.permute.xlu0 %718
      %720 = vrot.lane.b32.xlu0 %v616, 113
      %v721 = vpop.permute.xlu0 %720
      %722 = vrot.lane.b32.xlu0 %v635, 113
      %v723 = vpop.permute.xlu0 %722
      %724 = vrot.lane.b32.xlu0 %v636, 113
      %v725 = vpop.permute.xlu0 %724
      %v726 = vsel %vm387, %v723, %v725
      %v727 = vsel %vm387, %v721, %v723
      %v728 = vsel %vm387, %v719, %v721
      %v729 = vsel %vm387, %v725, %v719
      %v730 = vmul.f32 %v728, %v395
      %v731 = vmul.f32 %v727, %v399
      %v732 = vmul.f32 %v726, %v403
      %v733 = vmul.f32 %v729, %v407
      %734 = vrot.lane.b32.xlu0 %v615, 112
      %v735 = vpop.permute.xlu0 %734
      %736 = vrot.lane.b32.xlu0 %v616, 112
      %v737 = vpop.permute.xlu0 %736
      %738 = vrot.lane.b32.xlu0 %v635, 112
      %v739 = vpop.permute.xlu0 %738
      %740 = vrot.lane.b32.xlu0 %v636, 112
      %v741 = vpop.permute.xlu0 %740
      %v742 = vsel %vm420, %v739, %v741
      %v743 = vsel %vm420, %v737, %v739
      %v744 = vsel %vm420, %v735, %v737
      %v745 = vsel %vm420, %v741, %v735
      %v746 = vmul.f32 %v744, %v428
      %v747 = vmul.f32 %v743, %v432
      %v748 = vmul.f32 %v742, %v436
      %v749 = vmul.f32 %v745, %v440
      %750 = vrot.lane.b32.xlu0 %v615, 111
      %v751 = vpop.permute.xlu0 %750
      %752 = vrot.lane.b32.xlu0 %v616, 111
      %v753 = vpop.permute.xlu0 %752
      %754 = vrot.lane.b32.xlu0 %v635, 111
      %v755 = vpop.permute.xlu0 %754
      %756 = vrot.lane.b32.xlu0 %v636, 111
      %v757 = vpop.permute.xlu0 %756
      %v758 = vsel %vm453, %v755, %v757
      %v759 = vsel %vm453, %v753, %v755
      %v760 = vsel %vm453, %v751, %v753
      %v761 = vsel %vm453, %v757, %v751
      %v762 = vmul.f32 %v760, %v461
      %v763 = vmul.f32 %v759, %v465
      %v764 = vmul.f32 %v758, %v469
      %v765 = vmul.f32 %v761, %v473
      %v766 = vpack.c.bf16 %v666, %v650
      %v767 = vpack.c.bf16 %v667, %v651
      %v768 = vpack.c.bf16 %v668, %v652
      %v769 = vpack.c.bf16 %v669, %v653
      %v770 = vpack.c.bf16 %v698, %v682
      %v771 = vpack.c.bf16 %v699, %v683
      %v772 = vpack.c.bf16 %v700, %v684
      %v773 = vpack.c.bf16 %v701, %v685
      %v774 = vpack.c.bf16 %v714, %v615
      %v775 = vpack.c.bf16 %v715, %v616
      %v776 = vpack.c.bf16 %v716, %v635
      %v777 = vpack.c.bf16 %v717, %v636
      %v778 = vpack.c.bf16 %v746, %v730
      %v779 = vpack.c.bf16 %v747, %v731
      %v780 = vpack.c.bf16 %v748, %v732
      %v781 = vpack.c.bf16 %v749, %v733
      %v782 = vpack.c.bf16 %v762, %v762
      %v783 = vpack.c.bf16 %v763, %v763
      %v784 = vpack.c.bf16 %v764, %v764
      %v785 = vpack.c.bf16 %v765, %v765
      %v787 = vsel %vm498, %v637, 0
      %v790 = vsel %vm502, %v782, 0
      %v793 = vsel %vm502, %v783, 0
      %v796 = vsel %vm502, %v784, 0
      %v799 = vsel %vm502, %v785, 0
      %801 = vmatprep.subr.bf16.mxu0 0
      %802 = vmatpush1.bf16.msra.mxu0 0
      %803 = vmatprep.subr.bf16.mxu0 0
      %804 = vmatpush1.bf16.msra.mxu0 0
      %805 = vmatprep.subr.bf16.mxu0 0
      %806 = vmatpush1.bf16.msra.mxu0 0
      %807 = vmatprep.subr.bf16.mxu0 %v793
      %808 = vmatpush1.bf16.msra.mxu0 %v790
      %809 = vmatprep.subr.bf16.mxu0 %v779
      %810 = vmatpush1.bf16.msra.mxu0 %v778
      %811 = vmatprep.subr.bf16.mxu0 %v775
      %812 = vmatpush1.bf16.msra.mxu0 %v774
      %813 = vmatprep.subr.bf16.mxu0 %v771
      %814 = vmatpush1.bf16.msra.mxu0 %v770
      %815 = vmatprep.subr.bf16.mxu0 %v767
      %816 = vmatpush1.bf16.msra.mxu0 %v766
      %817 = vmatprep.subr.bf16.mxu0 0
      %818 = vmatpush2.bf16.msra.mxu0 0
      %819 = vmatprep.subr.bf16.mxu0 0
      %820 = vmatpush2.bf16.msra.mxu0 0
      %821 = vmatprep.subr.bf16.mxu0 0
      %822 = vmatpush2.bf16.msra.mxu0 0
      %823 = vmatprep.subr.bf16.mxu0 0
      %824 = vmatpush2.bf16.msra.mxu0 0
      %825 = vmatprep.subr.bf16.mxu0 0
      %826 = vmatpush2.bf16.msra.mxu0 0
      %827 = vmatprep.subr.bf16.mxu0 0
      %828 = vmatpush2.bf16.msra.mxu0 0
      %829 = vmatprep.subr.bf16.mxu0 0
      %830 = vmatpush2.bf16.msra.mxu0 0
      %831 = vmatprep.subr.bf16.mxu0 0
      %832 = vmatpush2.bf16.msra.mxu0 0
      %833 = vmatprep.mubr.bf16.mxu0 0
      %834 = vmatmul.mubr.bf16.gmra.mxu0 %v787
      %v835 = vpop.f32.mrf.mxu0
      %v836 = vadd.f32 0.0, %v835
      %v837 = vpop.f32.mrf.mxu0
      %v838 = vadd.f32 0.0, %v837
      %v839 = vpop.f32.mrf.mxu0
      %v840 = vpop.f32.mrf.mxu0
      %841 = vdwg.mxu0
      %842 = vmatprep.subr.bf16.mxu0 0
      %843 = vmatpush1.bf16.msra.mxu0 0
      %844 = vmatprep.subr.bf16.mxu0 0
      %845 = vmatpush1.bf16.msra.mxu0 0
      %846 = vmatprep.subr.bf16.mxu0 0
      %847 = vmatpush1.bf16.msra.mxu0 0
      %848 = vmatprep.subr.bf16.mxu0 %v799
      %849 = vmatpush1.bf16.msra.mxu0 %v796
      %850 = vmatprep.subr.bf16.mxu0 %v781
      %851 = vmatpush1.bf16.msra.mxu0 %v780
      %852 = vmatprep.subr.bf16.mxu0 %v777
      %853 = vmatpush1.bf16.msra.mxu0 %v776
      %854 = vmatprep.subr.bf16.mxu0 %v773
      %855 = vmatpush1.bf16.msra.mxu0 %v772
      %856 = vmatprep.subr.bf16.mxu0 %v769
      %857 = vmatpush1.bf16.msra.mxu0 %v768
      %858 = vmatprep.subr.bf16.mxu0 0
      %859 = vmatpush2.bf16.msra.mxu0 0
      %860 = vmatprep.subr.bf16.mxu0 0
      %861 = vmatpush2.bf16.msra.mxu0 0
      %862 = vmatprep.subr.bf16.mxu0 0
      %863 = vmatpush2.bf16.msra.mxu0 0
      %864 = vmatprep.subr.bf16.mxu0 0
      %865 = vmatpush2.bf16.msra.mxu0 0
      %866 = vmatprep.subr.bf16.mxu0 0
      %867 = vmatpush2.bf16.msra.mxu0 0
      %868 = vmatprep.subr.bf16.mxu0 0
      %869 = vmatpush2.bf16.msra.mxu0 0
      %870 = vmatprep.subr.bf16.mxu0 0
      %871 = vmatpush2.bf16.msra.mxu0 0
      %872 = vmatprep.subr.bf16.mxu0 0
      %873 = vmatpush2.bf16.msra.mxu0 0
      %874 = vmatprep.mubr.bf16.mxu0 0
      %875 = vmatmul.mubr.bf16.gmra.mxu0 %v787
      %v876 = vpop.f32.mrf.mxu0
      %v877 = vadd.f32 0.0, %v876
      %v878 = vpop.f32.mrf.mxu0
      %v879 = vadd.f32 0.0, %v878
      %v880 = vpop.f32.mrf.mxu0
      %v881 = vpop.f32.mrf.mxu0
      %882 = vdwg.mxu0
      %v883 = vadd.f32 %v836, %v838
      %884 = vadd.xlane.f32.xlu0 %v883
      %v885 = vpop.xlane.xlu0 %884
      %v886 = vmul.f32 %v836, %v836
      %v887 = vmul.f32 %v838, %v838
      %v888 = vadd.f32 %v886, %v887
      %889 = vadd.xlane.f32.xlu0 %v888
      %v890 = vpop.xlane.xlu0 %889
      %v891 = vmul.f32 %v885, 0.00390625
      %v892 = vmul.f32 %v890, 0.00390625
      %v893 = vmul.f32 %v891, %v891
      %v894 = vsub.f32 %v892, %v893
      %v895 = vsub.f32 %v836, %v891
      %v896 = vsub.f32 %v838, %v891
      %v897 = vadd.f32 %v894, 1e-05
      %v898 = vrsqrt.pop %v897
      %v899 = vmul.f32 %v895, %v898
      %v900 = vmul.f32 %v896, %v898
      %v901 = vmax.f32 %v899, 0.0
      %v902 = vmax.f32 %v900, 0.0
      %v903 = vadd.f32 %v877, %v879
      %904 = vadd.xlane.f32.xlu0 %v903
      %v905 = vpop.xlane.xlu0 %904
      %v906 = vmul.f32 %v877, %v877
      %v907 = vmul.f32 %v879, %v879
      %v908 = vadd.f32 %v906, %v907
      %909 = vadd.xlane.f32.xlu0 %v908
      %v910 = vpop.xlane.xlu0 %909
      %v911 = vmul.f32 %v905, 0.00390625
      %v912 = vmul.f32 %v910, 0.00390625
      %v913 = vmul.f32 %v911, %v911
      %v914 = vsub.f32 %v912, %v913
      %v915 = vsub.f32 %v877, %v911
      %v916 = vsub.f32 %v879, %v911
      %v917 = vadd.f32 %v914, 1e-05
      %v918 = vrsqrt.pop %v917
      %v919 = vmul.f32 %v915, %v918
      %v920 = vmul.f32 %v916, %v918
      %v921 = vmax.f32 %v919, 0.0
      %v922 = vmax.f32 %v920, 0.0
      %923 = vst [vmem:[%s197] sm:$0xff] %v901
      %924 = vst [vmem:[%s197 + $0x8] sm:$0xff] %v902
      %925 = vst [vmem:[%s197 + $0x10] sm:$0xff] %v921
      %926 = vst [vmem:[%s197 + $0x18] sm:$0xff] %v922
      %p927 = scmp.lt.s32.totalorder %s15, 1
      %s928 = scalar_select %p927, %s15, 1
      %s929 = smul.addr %s928, 4
      %s930 = smul.addr %s929, 8
      %s931 = scalar_lea.vmem %s4, %s930
      // Predicated region
      $region37: #{conv_block_forward.1} parent=35 // pred_check
        %p932 = pneg %p122
      $region38: #{conv_block_forward.1} parent=35 // pred_check_branch
        %934 = sbr.rel (%p932) target = $region40
      $region39: #{conv_block_forward.1} parent=35 // pred_region
        _
      $region40: #{conv_block_forward.1} parent=35 // pred_fallthru
        _
    $region36: #{conv_block_forward.1} parent=5 // pred_fallthru
      _
    %p935 = scmp.le.s32.totalorder 2, %s10
    // Predicated region
    $region41: #{conv_block_forward.1} parent=5 // pred_check
      %p936 = pneg %p935
    $region42: #{conv_block_forward.1} parent=5 // pred_check_branch
      %938 = sbr.rel (%p936) target = $region44
    $region43: #{conv_block_forward.1} parent=5 // pred_region
      %s939 = ssub.s32 %s10, 2
      // Predicated region
      $region45: #{conv_block_forward.1} parent=43 // pred_check
        %p940 = pneg %p128
      $region46: #{conv_block_forward.1} parent=43 // pred_check_branch
        %942 = sbr.rel (%p940) target = $region48
      $region47: #{conv_block_forward.1} parent=43 // pred_region
        %p943 = scmp.lt.s32.totalorder %s16, 1
        %s944 = scalar_select %p943, %s16, 1
        %s945 = smul.addr %s944, 4
        %s946 = smul.addr %s945, 8
        %s947 = scalar_lea.vmem %s4, %s946
      $region48: #{conv_block_forward.1} parent=43 // pred_fallthru
        _
    $region44: #{conv_block_forward.1} parent=5 // pred_fallthru
      _
  $region6: #{conv_block_forward.1} parent=0 // loop_footer
    %s14 = sadd.s32 1, %s10
  $region7: #{conv_block_forward.1} parent=0 // loop_footer_branch
    %9 = sbr.rel target = $region3
  $region8: #{conv_block_forward.1} parent=0 // loop_exit
    _

</llo_original>
